<compile_context>
chip_gen: v7x
topology: tpu7x:2x2x1
jax: 0.10.0
libtpu: 0.0.40
codegen_flags: <defaults>
</compile_context>

<pallas_src>
import functools

import jax
import jax.numpy as jnp
import numpy as np
from jax.experimental import pallas as pl
from jax.experimental.pallas import tpu as pltpu


# ----------------------------- tiling helpers ------------------------------

def _pick_spatial_tile(hw, c, itemsize=4, target_bytes=2 << 20):
    """Largest lane tile T with T % 128 == 0, hw % T == 0, C*T*itemsize <= target.

    Falls back to the full extent when hw is not a multiple of 128 (full-extent
    blocks are always legal; they just use masked partial stores).
    """
    if hw % 128 != 0:
        # TODO(synk): pad HW to a multiple of 128 for lane-dense stores on odd shapes.
        return hw
    max_lanes = max(128, (target_bytes // max(1, c * itemsize)) // 128 * 128)
    best = 128
    t = 128
    limit = min(hw, max_lanes)
    while t <= limit:
        if hw % t == 0:
            best = t
        t += 128
    return best


def _pick_batch_block(b, c, t, itemsize=4, target_bytes=512 * 1024):
    """Fuse several batch images per grid step when one (1, C, T) block is tiny
    (per-grid-step overhead ~0.35us -> overhead-bound otherwise)."""
    per_image = max(1, c * t * itemsize)
    want = max(1, min(b, -(-target_bytes // per_image)))
    while b % want:
        want -= 1
    return want


# -------------------------------- kernels -----------------------------------

def _pool_kernel(x_ref, o_ref, *, inv_hw):
    # x_ref: (Bt, C, T); o_ref: (Bt, C, 1) resident accumulator over spatial tiles.
    t = pl.program_id(1)

    @pl.when(t == 0)
    def _():
        o_ref[...] = jnp.zeros_like(o_ref)

    o_ref[...] += jnp.sum(x_ref[...], axis=-1, keepdims=True)

    @pl.when(t == pl.num_programs(1) - 1)
    def _():
        o_ref[...] = o_ref[...] * inv_hw


def _se_scale_kernel(pooled_ref, deg_ref, w1p_ref, w1d_ref, w2_ref, scale_ref):
    # pooled/deg: (C, B); w1p/w1d: (mid, C); w2: (C, mid); scale out: (C, B).
    # 1x1 convs on a 1x1 map are plain matmuls; cat([pooled, deg]) folds into a
    # sum of two matmuls via the column split of W1.  Batched over B -> sane
    # MXU shapes (mid,2C)x(2C,B) instead of N=1 matmuls per grid step.
    h = (jnp.dot(w1p_ref[...], pooled_ref[...], preferred_element_type=jnp.float32)
         + jnp.dot(w1d_ref[...], deg_ref[...], preferred_element_type=jnp.float32))
    h = jnp.where(h >= 0, h, 0.1 * h)                     # LeakyReLU(0.1)
    s = jnp.dot(w2_ref[...], h, preferred_element_type=jnp.float32)
    scale_ref[...] = 1.0 + 1.0 / (1.0 + jnp.exp(-s))      # 1 + sigmoid(s)


def _modulate_kernel(x_ref, scale_ref, o_ref):
    # out = x + x*s == x * (1 + s); pure HBM streaming pass (one VPU mul/vreg).
    o_ref[...] = x_ref[...] * scale_ref[...]


# -------------------------------- wrapper ------------------------------------

def da_conv_forward(x_nchw, deg, w1, w2):
    """x_nchw: (B, C, H, W) f32; deg: (B, C) f32; w1: (mid, 2C); w2: (C, mid)."""
    B, C, H, W = x_nchw.shape
    mid = w1.shape[0]
    hw = H * W
    itemsize = int(jnp.dtype(x_nchw.dtype).itemsize)

    x_flat = x_nchw.reshape(B, C, hw)

    T = _pick_spatial_tile(hw, C, itemsize)
    Bt = _pick_batch_block(B, C, T, itemsize)
    grid = (B // Bt, hw // T)

    x_spec = pl.BlockSpec((Bt, C, T), lambda bi, ti: (bi, 0, ti))
    vec_spec = pl.BlockSpec((Bt, C, 1), lambda bi, ti: (bi, 0, 0))

    # ---- pass 1: tiled global average pool -> (B, C, 1) ----
    pooled = pl.pallas_call(
        functools.partial(_pool_kernel, inv_hw=1.0 / hw),
        out_shape=jax.ShapeDtypeStruct((B, C, 1), jnp.float32),
        grid_spec=pltpu.PrefetchScalarGridSpec(
            num_scalar_prefetch=0,
            grid=grid,
            in_specs=[x_spec],
            out_specs=vec_spec),
        compiler_params=pltpu.CompilerParams(
            dimension_semantics=("parallel", "arbitrary")),
        cost_estimate=pl.CostEstimate(
            flops=int(B * C * hw),
            transcendentals=0,
            bytes_accessed=int(itemsize * (B * C * hw + B * C))),
    )(x_flat)

    # ---- pass 2: squeeze-excite, batched over B in (C, B) orientation ----
    pooled_cb = pooled.reshape(B, C).T            # (C, B)
    deg_cb = deg.astype(jnp.float32).T            # (C, B)
    w1p = w1[:, :C]                               # acts on pooled features
    w1d = w1[:, C:]                               # acts on degradation rep

    def full(shape):
        return pl.BlockSpec(shape, lambda i, _s=shape: (0,) * len(_s))

    scale_cb = pl.pallas_call(
        _se_scale_kernel,
        out_shape=jax.ShapeDtypeStruct((C, B), jnp.float32),
        grid_spec=pltpu.PrefetchScalarGridSpec(
            num_scalar_prefetch=0,
            grid=(1,),
            in_specs=[full((C, B)), full((C, B)), full((mid, C)),
                      full((mid, C)), full((C, mid))],
            out_specs=full((C, B))),
        compiler_params=pltpu.CompilerParams(
            dimension_semantics=("arbitrary",)),
    )(pooled_cb, deg_cb, w1p, w1d, w2)

    scale = scale_cb.T.reshape(B, C, 1)           # (B, C, 1), value = 1 + s

    # ---- pass 3: streaming channel modulation out = x * (1 + s) ----
    out = pl.pallas_call(
        _modulate_kernel,
        out_shape=jax.ShapeDtypeStruct((B, C, hw), x_flat.dtype),
        grid_spec=pltpu.PrefetchScalarGridSpec(
            num_scalar_prefetch=0,
            grid=grid,
            in_specs=[x_spec, vec_spec],
            out_specs=x_spec),
        compiler_params=pltpu.CompilerParams(
            dimension_semantics=("parallel", "parallel")),
        cost_estimate=pl.CostEstimate(
            flops=int(B * C * hw),
            transcendentals=0,
            bytes_accessed=int(itemsize * (2 * B * C * hw + B * C))),
        input_output_aliases={0: 0},
    )(x_flat, scale)

    return out.reshape(B, C, H, W)


def da_conv_reference(x_nchw, deg, w1, w2):
    """Plain-JAX reference mirroring the PyTorch forward."""
    pooled = x_nchw.mean(axis=(2, 3))                       # (B, C)
    v = jnp.concatenate([pooled, deg], axis=1)              # (B, 2C)
    h = v @ w1.T
    h = jnp.where(h >= 0, h, 0.1 * h)                       # LeakyReLU(0.1)
    s = jax.nn.sigmoid(h @ w2.T)                            # (B, C)
    return x_nchw + x_nchw * s[:, :, None, None]


if __name__ == "__main__":
    # Small shapes consistent with the module: channels_in == channels_out
    # (required by the broadcast `x[0] * out` in the PyTorch forward).
    B, C, H, W = 2, 8, 16, 16
    reduction = 4
    mid = (2 * C) // reduction

    key = jax.random.PRNGKey(0)
    k_x, k_d, k_w1, k_w2 = jax.random.split(key, 4)

    x = jax.random.normal(k_x, (B, C, H, W), dtype=jnp.float32)
    deg = jax.random.normal(k_d, (B, C), dtype=jnp.float32)

    # Deterministic synthetic init (Conv2d-like uniform bound 1/sqrt(fan_in)).
    b1 = 1.0 / np.sqrt(2 * C)
    b2 = 1.0 / np.sqrt(mid)
    w1 = jax.random.uniform(k_w1, (mid, 2 * C), jnp.float32, -b1, b1)  # conv_se[0].weight
    w2 = jax.random.uniform(k_w2, (C, mid), jnp.float32, -b2, b2)      # conv_se[2].weight

    ref = jax.block_until_ready(da_conv_reference(x, deg, w1, w2))

    fwd = jax.jit(da_conv_forward)
    out = jax.block_until_ready(fwd(x, deg, w1, w2))

    np.testing.assert_allclose(np.asarray(out), np.asarray(ref),
                               rtol=1e-5, atol=1e-5)
    print("KERNEL_OK")
</pallas_src>

<mosaic_0001>
module attributes {stable_mosaic.version = 11 : i64} {
  func.func @_pool_kernel(%arg0: i32, %arg1: i32, %arg2: memref<2x8x256xf32, #tpu.memory_space<vmem>>, %arg3: memref<2x8x1xf32, #tpu.memory_space<vmem>>) attributes {dimension_semantics = [#tpu.dimension_semantics<parallel>, #tpu.dimension_semantics<arbitrary>], iteration_bounds = array<i64: 1, 1>, scalar_prefetch = 0 : i64, scratch_operands = 0 : i64, tpu.core_type = #tpu.core_type<tc>, window_params = [{transform_indices = @transform_0, window_bounds = array<i64: 2, 8, 256>}, {transform_indices = @transform_1, window_bounds = array<i64: 2, 8, 1>}]} {
    %c0_i32 = arith.constant 0 : i32
    %0 = arith.cmpi eq, %arg1, %c0_i32 : i32
    %1 = arith.extui %0 : i1 to i32
    %c0_i32_0 = arith.constant 0 : i32
    %2 = arith.cmpi ne, %1, %c0_i32_0 : i32
    scf.if %2 {
      %cst_11 = arith.constant 0.000000e+00 : f32
      %12 = vector.broadcast %cst_11 : f32 to vector<2x8x1xf32>
      %c0_12 = arith.constant 0 : index
      %c0_13 = arith.constant 0 : index
      %c0_14 = arith.constant 0 : index
      %13 = vector.load %arg3[%c0_12, %c0_13, %c0_14] : memref<2x8x1xf32, #tpu.memory_space<vmem>>, vector<2x8x1xf32>
      tpu.vector_store %arg3[%c0_12, %c0_13, %c0_14], %12 {strides = array<i32>} : memref<2x8x1xf32, #tpu.memory_space<vmem>>, vector<2x8x1xf32>,
    } else {
    }
    %c0 = arith.constant 0 : index
    %c0_1 = arith.constant 0 : index
    %c0_2 = arith.constant 0 : index
    %3 = vector.load %arg3[%c0, %c0_1, %c0_2] : memref<2x8x1xf32, #tpu.memory_space<vmem>>, vector<2x8x1xf32>
    %c0_3 = arith.constant 0 : index
    %c0_4 = arith.constant 0 : index
    %c0_5 = arith.constant 0 : index
    %4 = vector.load %arg2[%c0_3, %c0_4, %c0_5] : memref<2x8x256xf32, #tpu.memory_space<vmem>>, vector<2x8x256xf32>
    %cst = arith.constant dense<0.000000e+00> : vector<2x8xf32>
    %5 = vector.multi_reduction <add>, %4, %cst [2] : vector<2x8x256xf32> to vector<2x8xf32>
    %6 = vector.shape_cast %5 : vector<2x8xf32> to vector<2x8x1xf32>
    %7 = arith.addf %3, %6 : vector<2x8x1xf32>
    %c0_6 = arith.constant 0 : index
    %c0_7 = arith.constant 0 : index
    %c0_8 = arith.constant 0 : index
    %8 = vector.load %arg3[%c0_6, %c0_7, %c0_8] : memref<2x8x1xf32, #tpu.memory_space<vmem>>, vector<2x8x1xf32>
    tpu.vector_store %arg3[%c0_6, %c0_7, %c0_8], %7 {strides = array<i32>} : memref<2x8x1xf32, #tpu.memory_space<vmem>>, vector<2x8x1xf32>,
    %c0_i32_9 = arith.constant 0 : i32
    %9 = arith.cmpi eq, %arg1, %c0_i32_9 : i32
    %10 = arith.extui %9 : i1 to i32
    %c0_i32_10 = arith.constant 0 : i32
    %11 = arith.cmpi ne, %10, %c0_i32_10 : i32
    scf.if %11 {
      %c0_11 = arith.constant 0 : index
      %c0_12 = arith.constant 0 : index
      %c0_13 = arith.constant 0 : index
      %12 = vector.load %arg3[%c0_11, %c0_12, %c0_13] : memref<2x8x1xf32, #tpu.memory_space<vmem>>, vector<2x8x1xf32>
      %cst_14 = arith.constant 3.906250e-03 : f32
      %13 = vector.broadcast %cst_14 : f32 to vector<2x8x1xf32>
      %14 = arith.mulf %12, %13 : vector<2x8x1xf32>
      %c0_15 = arith.constant 0 : index
      %c0_16 = arith.constant 0 : index
      %c0_17 = arith.constant 0 : index
      %15 = vector.load %arg3[%c0_15, %c0_16, %c0_17] : memref<2x8x1xf32, #tpu.memory_space<vmem>>, vector<2x8x1xf32>
      tpu.vector_store %arg3[%c0_15, %c0_16, %c0_17], %14 {strides = array<i32>} : memref<2x8x1xf32, #tpu.memory_space<vmem>>, vector<2x8x1xf32>,
    } else {
    }
    return
  }
  func.func @transform_0(%arg0: i32, %arg1: i32) -> (i32, i32, i32) {
    %c0_i32 = arith.constant 0 : i32
    %c0_i32_0 = arith.constant 0 : i32
    return %arg0, %c0_i32, %arg1 : i32, i32, i32
  }
  func.func @transform_1(%arg0: i32, %arg1: i32) -> (i32, i32, i32) {
    %c0_i32 = arith.constant 0 : i32
    %c0_i32_0 = arith.constant 0 : i32
    %c0_i32_1 = arith.constant 0 : i32
    return %arg0, %c0_i32, %c0_i32_0 : i32, i32, i32
  }
}

module attributes {stable_mosaic.version = 11 : i64} {
  func.func @_se_scale_kernel(%arg0: i32, %arg1: memref<8x2xf32, #tpu.memory_space<vmem>>, %arg2: memref<8x2xf32, #tpu.memory_space<vmem>>, %arg3: memref<4x8xf32, #tpu.memory_space<vmem>>, %arg4: memref<4x8xf32, #tpu.memory_space<vmem>>, %arg5: memref<8x4xf32, #tpu.memory_space<vmem>>, %arg6: memref<8x2xf32, #tpu.memory_space<vmem>>) attributes {dimension_semantics = [#tpu.dimension_semantics<arbitrary>], iteration_bounds = array<i64: 1>, scalar_prefetch = 0 : i64, scratch_operands = 0 : i64, tpu.core_type = #tpu.core_type<tc>, window_params = [{pipeline_mode = #tpu.pipeline_mode<synchronous>, transform_indices = @transform_0, window_bounds = array<i64: 8, 2>}, {pipeline_mode = #tpu.pipeline_mode<synchronous>, transform_indices = @transform_1, window_bounds = array<i64: 8, 2>}, {pipeline_mode = #tpu.pipeline_mode<synchronous>, transform_indices = @transform_2, window_bounds = array<i64: 4, 8>}, {pipeline_mode = #tpu.pipeline_mode<synchronous>, transform_indices = @transform_3, window_bounds = array<i64: 4, 8>}, {pipeline_mode = #tpu.pipeline_mode<synchronous>, transform_indices = @transform_4, window_bounds = array<i64: 8, 4>}, {pipeline_mode = #tpu.pipeline_mode<synchronous>, transform_indices = @transform_5, window_bounds = array<i64: 8, 2>}]} {
    %c0 = arith.constant 0 : index
    %c0_0 = arith.constant 0 : index
    %0 = vector.load %arg3[%c0, %c0_0] : memref<4x8xf32, #tpu.memory_space<vmem>>, vector<4x8xf32>
    %c0_1 = arith.constant 0 : index
    %c0_2 = arith.constant 0 : index
    %1 = vector.load %arg1[%c0_1, %c0_2] : memref<8x2xf32, #tpu.memory_space<vmem>>, vector<8x2xf32>
    %cst = arith.constant dense<0.000000e+00> : vector<4x2xf32>
    %2 = tpu.matmul %0, %1, %cst {dimension_numbers = #tpu.dot_dimension_numbers<[1], [0], [0], [1], [0, 0, 1, 1], [], []>} : vector<4x8xf32>, vector<8x2xf32>, vector<4x2xf32> -> vector<4x2xf32>
    %c0_3 = arith.constant 0 : index
    %c0_4 = arith.constant 0 : index
    %3 = vector.load %arg4[%c0_3, %c0_4] : memref<4x8xf32, #tpu.memory_space<vmem>>, vector<4x8xf32>
    %c0_5 = arith.constant 0 : index
    %c0_6 = arith.constant 0 : index
    %4 = vector.load %arg2[%c0_5, %c0_6] : memref<8x2xf32, #tpu.memory_space<vmem>>, vector<8x2xf32>
    %cst_7 = arith.constant dense<0.000000e+00> : vector<4x2xf32>
    %5 = tpu.matmul %3, %4, %cst_7 {dimension_numbers = #tpu.dot_dimension_numbers<[1], [0], [0], [1], [0, 0, 1, 1], [], []>} : vector<4x8xf32>, vector<8x2xf32>, vector<4x2xf32> -> vector<4x2xf32>
    %6 = arith.addf %2, %5 : vector<4x2xf32>
    %cst_8 = arith.constant 0.000000e+00 : f32
    %7 = vector.broadcast %cst_8 : f32 to vector<4x2xf32>
    %8 = arith.cmpf oge, %6, %7 : vector<4x2xf32>
    %cst_9 = arith.constant 1.000000e-01 : f32
    %9 = vector.broadcast %cst_9 : f32 to vector<4x2xf32>
    %10 = arith.mulf %9, %6 : vector<4x2xf32>
    %11 = arith.select %8, %6, %10 : vector<4x2xi1>, vector<4x2xf32>
    %c0_10 = arith.constant 0 : index
    %c0_11 = arith.constant 0 : index
    %12 = vector.load %arg5[%c0_10, %c0_11] : memref<8x4xf32, #tpu.memory_space<vmem>>, vector<8x4xf32>
    %cst_12 = arith.constant dense<0.000000e+00> : vector<8x2xf32>
    %13 = tpu.matmul %12, %11, %cst_12 {dimension_numbers = #tpu.dot_dimension_numbers<[1], [0], [0], [1], [0, 0, 1, 1], [], []>} : vector<8x4xf32>, vector<4x2xf32>, vector<8x2xf32> -> vector<8x2xf32>
    %cst_13 = arith.constant 0.000000e+00 : f32
    %14 = vector.broadcast %cst_13 : f32 to vector<8x2xf32>
    %15 = arith.subf %14, %13 : vector<8x2xf32>
    %16 = math.exp %15 : vector<8x2xf32>
    %cst_14 = arith.constant 1.000000e+00 : f32
    %17 = vector.broadcast %cst_14 : f32 to vector<8x2xf32>
    %18 = arith.addf %17, %16 : vector<8x2xf32>
    %cst_15 = arith.constant 1.000000e+00 : f32
    %19 = vector.broadcast %cst_15 : f32 to vector<8x2xf32>
    %20 = arith.divf %19, %18 : vector<8x2xf32>
    %cst_16 = arith.constant 1.000000e+00 : f32
    %21 = vector.broadcast %cst_16 : f32 to vector<8x2xf32>
    %22 = arith.addf %21, %20 : vector<8x2xf32>
    %c0_17 = arith.constant 0 : index
    %c0_18 = arith.constant 0 : index
    %23 = vector.load %arg6[%c0_17, %c0_18] : memref<8x2xf32, #tpu.memory_space<vmem>>, vector<8x2xf32>
    tpu.vector_store %arg6[%c0_17, %c0_18], %22 {strides = array<i32>} : memref<8x2xf32, #tpu.memory_space<vmem>>, vector<8x2xf32>,
    return
  }
  func.func @transform_0(%arg0: i32) -> (i32, i32) {
    %c0_i32 = arith.constant 0 : i32
    %c0_i32_0 = arith.constant 0 : i32
    %c0_i32_1 = arith.constant 0 : i32
    return %c0_i32, %c0_i32_0 : i32, i32
  }
  func.func @transform_1(%arg0: i32) -> (i32, i32) {
    %c0_i32 = arith.constant 0 : i32
    %c0_i32_0 = arith.constant 0 : i32
    %c0_i32_1 = arith.constant 0 : i32
    return %c0_i32, %c0_i32_0 : i32, i32
  }
  func.func @transform_2(%arg0: i32) -> (i32, i32) {
    %c0_i32 = arith.constant 0 : i32
    %c0_i32_0 = arith.constant 0 : i32
    %c0_i32_1 = arith.constant 0 : i32
    return %c0_i32, %c0_i32_0 : i32, i32
  }
  func.func @transform_3(%arg0: i32) -> (i32, i32) {
    %c0_i32 = arith.constant 0 : i32
    %c0_i32_0 = arith.constant 0 : i32
    %c0_i32_1 = arith.constant 0 : i32
    return %c0_i32, %c0_i32_0 : i32, i32
  }
  func.func @transform_4(%arg0: i32) -> (i32, i32) {
    %c0_i32 = arith.constant 0 : i32
    %c0_i32_0 = arith.constant 0 : i32
    %c0_i32_1 = arith.constant 0 : i32
    return %c0_i32, %c0_i32_0 : i32, i32
  }
  func.func @transform_5(%arg0: i32) -> (i32, i32) {
    %c0_i32 = arith.constant 0 : i32
    %c0_i32_0 = arith.constant 0 : i32
    %c0_i32_1 = arith.constant 0 : i32
    return %c0_i32, %c0_i32_0 : i32, i32
  }
}

module attributes {stable_mosaic.version = 11 : i64} {
  func.func @_modulate_kernel(%arg0: i32, %arg1: i32, %arg2: memref<2x8x256xf32, #tpu.memory_space<vmem>>, %arg3: memref<2x8x1xf32, #tpu.memory_space<vmem>>, %arg4: memref<2x8x256xf32, #tpu.memory_space<vmem>>) attributes {dimension_semantics = [#tpu.dimension_semantics<parallel>, #tpu.dimension_semantics<parallel>], iteration_bounds = array<i64: 1, 1>, scalar_prefetch = 0 : i64, scratch_operands = 0 : i64, tpu.core_type = #tpu.core_type<tc>, window_params = [{transform_indices = @transform_0, window_bounds = array<i64: 2, 8, 256>}, {transform_indices = @transform_1, window_bounds = array<i64: 2, 8, 1>}, {transform_indices = @transform_2, window_bounds = array<i64: 2, 8, 256>}]} {
    %c0 = arith.constant 0 : index
    %c0_0 = arith.constant 0 : index
    %c0_1 = arith.constant 0 : index
    %0 = vector.load %arg2[%c0, %c0_0, %c0_1] : memref<2x8x256xf32, #tpu.memory_space<vmem>>, vector<2x8x256xf32>
    %c0_2 = arith.constant 0 : index
    %c0_3 = arith.constant 0 : index
    %c0_4 = arith.constant 0 : index
    %1 = vector.load %arg3[%c0_2, %c0_3, %c0_4] : memref<2x8x1xf32, #tpu.memory_space<vmem>>, vector<2x8x1xf32>
    %2 = vector.broadcast %1 : vector<2x8x1xf32> to vector<2x8x256xf32>
    %3 = arith.mulf %0, %2 : vector<2x8x256xf32>
    %c0_5 = arith.constant 0 : index
    %c0_6 = arith.constant 0 : index
    %c0_7 = arith.constant 0 : index
    %4 = vector.load %arg4[%c0_5, %c0_6, %c0_7] : memref<2x8x256xf32, #tpu.memory_space<vmem>>, vector<2x8x256xf32>
    tpu.vector_store %arg4[%c0_5, %c0_6, %c0_7], %3 {strides = array<i32>} : memref<2x8x256xf32, #tpu.memory_space<vmem>>, vector<2x8x256xf32>,
    return
  }
  func.func @transform_0(%arg0: i32, %arg1: i32) -> (i32, i32, i32) {
    %c0_i32 = arith.constant 0 : i32
    %c0_i32_0 = arith.constant 0 : i32
    return %arg0, %c0_i32, %arg1 : i32, i32, i32
  }
  func.func @transform_1(%arg0: i32, %arg1: i32) -> (i32, i32, i32) {
    %c0_i32 = arith.constant 0 : i32
    %c0_i32_0 = arith.constant 0 : i32
    %c0_i32_1 = arith.constant 0 : i32
    return %arg0, %c0_i32, %c0_i32_0 : i32, i32, i32
  }
  func.func @transform_2(%arg0: i32, %arg1: i32) -> (i32, i32, i32) {
    %c0_i32 = arith.constant 0 : i32
    %c0_i32_0 = arith.constant 0 : i32
    return %arg0, %c0_i32, %arg1 : i32, i32, i32
  }
}

</mosaic_0001>

<llo_original>
// kernel: da_conv_forward.5
$region0: #{da_conv_forward.5}
  #allocation0 [shape = 'u32[]', space=smem, size = 0x4, offset = 0x4, fixed_abs, tag = 'smem constant byte address 0x4 - core index']
  #allocation1 [shape = 'u32[144,128]{1,0:T(1,128)}', space=vmem, size = 0x12000, scoped, tag = 'internal scratch']
  %s0 = inlined_call_operand.vmem [shape: f32[2,8,256], index: 0, kind: input, shape index: {}, may-alias: {0,2}]
  %s1 = inlined_call_operand.vmem [shape: f32[2,8,1], index: 1, kind: input, shape index: {}]
  %s2 = inlined_call_operand.vmem [shape: f32[2,8,256], index: 2, kind: output, shape index: {}, may-alias: {0,2}]
  %s3 = sld [smem:[#allocation0]]
  $region18: #{da_conv_forward.5} parent=0
    _
  %s5 = ssub.s32 1, %s3
  %s6 = scalar_select 0, %s5, %s3
  // Predicated region
  $region2: #{da_conv_forward.5} parent=0 // pred_check
    _
  $region3: #{da_conv_forward.5} parent=0 // pred_check_branch
    %8 = sbr.rel (0) target = $region5
  $region4: #{da_conv_forward.5} parent=0 // pred_region
    _
  $region5: #{da_conv_forward.5} parent=0 // pred_fallthru
    _
  // Predicated region
  $region6: #{da_conv_forward.5} parent=0 // pred_check
    _
  $region7: #{da_conv_forward.5} parent=0 // pred_check_branch
    %10 = sbr.rel (0) target = $region9
  $region8: #{da_conv_forward.5} parent=0 // pred_region
    _
  $region9: #{da_conv_forward.5} parent=0 // pred_fallthru
    _
  %v11 = vld [vmem:[%s0] sm:$0xff]
  %v12 = vld [vmem:[%s0 + $0x8] sm:$0xff]
  %v13 = vld [vmem:[%s0 + $0x10] sm:$0xff]
  %v14 = vld [vmem:[%s0 + $0x18] sm:$0xff]
  %v15 = vld [vmem:[%s1] sm:$0xff]
  %v16 = vld [vmem:[%s1 + $0x8] sm:$0xff]
  %18 = vset.pattern.permute.xlu0 0
  %19 = vperm.xlu0 %18, %v15
  %v20 = vpop.permute.xlu0 %19
  %23 = vset.pattern.permute.xlu0 0
  %24 = vperm.xlu0 %23, %v16
  %v25 = vpop.permute.xlu0 %24
  %v27 = vmul.f32 %v11, %v20
  %v28 = vmul.f32 %v12, %v20
  %v29 = vmul.f32 %v13, %v25
  %v30 = vmul.f32 %v14, %v25
  %31 = vst [vmem:[%s2] sm:$0xff] %v27
  %32 = vst [vmem:[%s2 + $0x8] sm:$0xff] %v28
  %33 = vst [vmem:[%s2 + $0x10] sm:$0xff] %v29
  %34 = vst [vmem:[%s2 + $0x18] sm:$0xff] %v30
  // Predicated region
  $region10: #{da_conv_forward.5} parent=0 // pred_check
    _
  $region11: #{da_conv_forward.5} parent=0 // pred_check_branch
    %36 = sbr.rel (0) target = $region13
  $region12: #{da_conv_forward.5} parent=0 // pred_region
    _
  $region13: #{da_conv_forward.5} parent=0 // pred_fallthru
    _
  // Predicated region
  $region14: #{da_conv_forward.5} parent=0 // pred_check
    _
  $region15: #{da_conv_forward.5} parent=0 // pred_check_branch
    %38 = sbr.rel (0) target = $region17
  $region16: #{da_conv_forward.5} parent=0 // pred_region
    _
  $region17: #{da_conv_forward.5} parent=0 // pred_fallthru
    _

// kernel: da_conv_forward.3
$region0: #{da_conv_forward.3}
  #allocation0 [shape = 'u32[]', space=smem, size = 0x4, offset = 0x4, fixed_abs, tag = 'smem constant byte address 0x4 - core index']
  #allocation1 [shape = 'u32[144,128]{1,0:T(1,128)}', space=vmem, size = 0x12000, scoped, tag = 'internal scratch']
  %s0 = inlined_call_operand.vmem [shape: f32[2,8,256], index: 0, kind: input, shape index: {}]
  %s1 = inlined_call_operand.vmem [shape: f32[2,8,1], index: 1, kind: output, shape index: {}]
  %s2 = sld [smem:[#allocation0]]
  $region22: #{da_conv_forward.3} parent=0
    _
  %s4 = ssub.s32 1, %s2
  %s5 = scalar_select 0, %s4, %s2
  // Predicated region
  $region2: #{da_conv_forward.3} parent=0 // pred_check
    _
  $region3: #{da_conv_forward.3} parent=0 // pred_check_branch
    %7 = sbr.rel (0) target = $region5
  $region4: #{da_conv_forward.3} parent=0 // pred_region
    _
  $region5: #{da_conv_forward.3} parent=0 // pred_fallthru
    _
  %p8 = scmp.eq.s32.totalorder 0, 0
  // Predicated region
  $region6: #{da_conv_forward.3} parent=0 // pred_check
    %p9 = pneg %p8
  $region7: #{da_conv_forward.3} parent=0 // pred_check_branch
    %11 = sbr.rel (%p9) target = $region9
  $region8: #{da_conv_forward.3} parent=0 // pred_region
    %vm12 = vcmask 7168
    %13 = vst.msk [vmem:[%s1] sm:$0xff] %vm12, 0.0
    %14 = vst.msk [vmem:[%s1 + $0x8] sm:$0xff] %vm12, 0.0
  $region9: #{da_conv_forward.3} parent=0 // pred_fallthru
    _
  %v15 = vld [vmem:[%s1] sm:$0xff]
  %v16 = vld [vmem:[%s1 + $0x8] sm:$0xff]
  %v17 = vld [vmem:[%s0] sm:$0xff]
  %v18 = vld [vmem:[%s0 + $0x8] sm:$0xff]
  %v19 = vld [vmem:[%s0 + $0x10] sm:$0xff]
  %v20 = vld [vmem:[%s0 + $0x18] sm:$0xff]
  %v21 = vadd.f32 %v17, %v18
  %22 = vadd.xlane.f32.xlu0 %v21
  %v23 = vpop.xlane.xlu0 %22
  %v24 = vadd.f32 %v19, %v20
  %25 = vadd.xlane.f32.xlu0 %v24
  %v26 = vpop.xlane.xlu0 %25
  %v27 = vadd.f32 %v15, %v23
  %v28 = vadd.f32 %v16, %v26
  %vm29 = vcmask 7168
  %30 = vst.msk [vmem:[%s1] sm:$0xff] %vm29, %v27
  %31 = vst.msk [vmem:[%s1 + $0x8] sm:$0xff] %vm29, %v28
  // Predicated region
  $region10: #{da_conv_forward.3} parent=0 // pred_check
    %p32 = pneg %p8
  $region11: #{da_conv_forward.3} parent=0 // pred_check_branch
    %34 = sbr.rel (%p32) target = $region13
  $region12: #{da_conv_forward.3} parent=0 // pred_region
    %v35 = vld [vmem:[%s1] sm:$0xff]
    %v36 = vld [vmem:[%s1 + $0x8] sm:$0xff]
    %v37 = vmul.f32 %v35, 0.00390625
    %v38 = vmul.f32 %v36, 0.00390625
    %39 = vst.msk [vmem:[%s1] sm:$0xff] %vm29, %v37
    %40 = vst.msk [vmem:[%s1 + $0x8] sm:$0xff] %vm29, %v38
  $region13: #{da_conv_forward.3} parent=0 // pred_fallthru
    _
  // Predicated region
  $region14: #{da_conv_forward.3} parent=0 // pred_check
    _
  $region15: #{da_conv_forward.3} parent=0 // pred_check_branch
    %42 = sbr.rel (0) target = $region17
  $region16: #{da_conv_forward.3} parent=0 // pred_region
    _
  $region17: #{da_conv_forward.3} parent=0 // pred_fallthru
    _
  // Predicated region
  $region18: #{da_conv_forward.3} parent=0 // pred_check
    _
  $region19: #{da_conv_forward.3} parent=0 // pred_check_branch
    %44 = sbr.rel (0) target = $region21
  $region20: #{da_conv_forward.3} parent=0 // pred_region
    _
  $region21: #{da_conv_forward.3} parent=0 // pred_fallthru
    _

// kernel: da_conv_forward.4
$region0: #{da_conv_forward.4}
  #allocation0 [shape = 'u32[]', space=smem, size = 0x4, offset = 0x4, fixed_abs, tag = 'smem constant byte address 0x4 - core index']
  #allocation1 [shape = 'u32[144,128]{1,0:T(1,128)}', space=vmem, size = 0x12000, scoped, tag = 'internal scratch']
  %s0 = inlined_call_operand.vmem [shape: f32[8,2], index: 0, kind: input, shape index: {}]
  %s1 = inlined_call_operand.vmem [shape: f32[8,2], index: 1, kind: input, shape index: {}]
  %s2 = inlined_call_operand.vmem [shape: f32[4,8], index: 2, kind: input, shape index: {}]
  %s3 = inlined_call_operand.vmem [shape: f32[4,8], index: 3, kind: input, shape index: {}]
  %s4 = inlined_call_operand.vmem [shape: f32[8,4], index: 4, kind: input, shape index: {}]
  %s5 = inlined_call_operand.vmem [shape: f32[8,2], index: 5, kind: output, shape index: {}]
  %s6 = sld [smem:[#allocation0]]
  $region30: #{da_conv_forward.4} parent=0
    _
  %s8 = ssub.s32 1, %s6
  %s9 = scalar_select 0, %s8, %s6
  // Predicated region
  $region2: #{da_conv_forward.4} parent=0 // pred_check
    _
  $region3: #{da_conv_forward.4} parent=0 // pred_check_branch
    %11 = sbr.rel (0) target = $region5
  $region4: #{da_conv_forward.4} parent=0 // pred_region
    _
  $region5: #{da_conv_forward.4} parent=0 // pred_fallthru
    _
  // Predicated region
  $region6: #{da_conv_forward.4} parent=0 // pred_check
    _
  $region7: #{da_conv_forward.4} parent=0 // pred_check_branch
    %13 = sbr.rel (0) target = $region9
  $region8: #{da_conv_forward.4} parent=0 // pred_region
    _
  $region9: #{da_conv_forward.4} parent=0 // pred_fallthru
    _
  // Predicated region
  $region10: #{da_conv_forward.4} parent=0 // pred_check
    _
  $region11: #{da_conv_forward.4} parent=0 // pred_check_branch
    %15 = sbr.rel (0) target = $region13
  $region12: #{da_conv_forward.4} parent=0 // pred_region
    _
  $region13: #{da_conv_forward.4} parent=0 // pred_fallthru
    _
  // Predicated region
  $region14: #{da_conv_forward.4} parent=0 // pred_check
    _
  $region15: #{da_conv_forward.4} parent=0 // pred_check_branch
    %17 = sbr.rel (0) target = $region17
  $region16: #{da_conv_forward.4} parent=0 // pred_region
    _
  $region17: #{da_conv_forward.4} parent=0 // pred_fallthru
    _
  // Predicated region
  $region18: #{da_conv_forward.4} parent=0 // pred_check
    _
  $region19: #{da_conv_forward.4} parent=0 // pred_check_branch
    %19 = sbr.rel (0) target = $region21
  $region20: #{da_conv_forward.4} parent=0 // pred_region
    _
  $region21: #{da_conv_forward.4} parent=0 // pred_fallthru
    _
  %v20 = vld [vmem:[%s2] sm:$0xf]
  %v21 = vld [vmem:[%s0] sm:$0xff]
  %v22 = vld [vmem:[%s3] sm:$0xf]
  %v23 = vld [vmem:[%s1] sm:$0xff]
  %vm24 = vcmask 64512
  %v26 = vsel %vm24, %v22, 0
  %28 = vmatprep.subr.mxu0 0.0
  %29 = vmatpush1.msra.mxu0 %v23
  %30 = vmatprep.subr.mxu0 0.0
  %31 = vmatpush1.msra.mxu0 0.0
  %32 = vmatprep.subr.mxu0 0.0
  %33 = vmatpush1.msra.mxu0 0.0
  %34 = vmatprep.subr.mxu0 0.0
  %35 = vmatpush1.msra.mxu0 0.0
  %36 = vmatprep.subr.mxu0 0.0
  %37 = vmatpush1.msra.mxu0 0.0
  %38 = vmatprep.subr.mxu0 0.0
  %39 = vmatpush1.msra.mxu0 0.0
  %40 = vmatprep.subr.mxu0 0.0
  %41 = vmatpush1.msra.mxu0 0.0
  %42 = vmatprep.subr.mxu0 0.0
  %43 = vmatpush1.msra.mxu0 0.0
  %44 = vmatprep.subr.mxu0 0.0
  %45 = vmatpush1.msra.mxu0 0.0
  %46 = vmatprep.subr.mxu0 0.0
  %47 = vmatpush1.msra.mxu0 0.0
  %48 = vmatprep.subr.mxu0 0.0
  %49 = vmatpush1.msra.mxu0 0.0
  %50 = vmatprep.subr.mxu0 0.0
  %51 = vmatpush1.msra.mxu0 0.0
  %52 = vmatprep.subr.mxu0 0.0
  %53 = vmatpush1.msra.mxu0 0.0
  %54 = vmatprep.subr.mxu0 0.0
  %55 = vmatpush1.msra.mxu0 0.0
  %56 = vmatprep.subr.mxu0 0.0
  %57 = vmatpush1.msra.mxu0 0.0
  %58 = vmatprep.subr.mxu0 0.0
  %59 = vmatpush1.msra.mxu0 0.0
  %60 = vmatprep.subr.mxu0 0.0
  %61 = vmatpush1.msra.mxu0 0.0
  %62 = vmatprep.subr.mxu0 0.0
  %63 = vmatpush1.msra.mxu0 0.0
  %64 = vmatprep.subr.mxu0 0.0
  %65 = vmatpush1.msra.mxu0 0.0
  %66 = vmatprep.subr.mxu0 0.0
  %67 = vmatpush1.msra.mxu0 0.0
  %68 = vmatprep.subr.mxu0 0.0
  %69 = vmatpush1.msra.mxu0 0.0
  %70 = vmatprep.subr.mxu0 0.0
  %71 = vmatpush1.msra.mxu0 0.0
  %72 = vmatprep.subr.mxu0 0.0
  %73 = vmatpush1.msra.mxu0 0.0
  %74 = vmatprep.subr.mxu0 0.0
  %75 = vmatpush1.msra.mxu0 0.0
  %76 = vmatprep.subr.mxu0 0.0
  %77 = vmatpush1.msra.mxu0 0.0
  %78 = vmatprep.subr.mxu0 0.0
  %79 = vmatpush1.msra.mxu0 0.0
  %80 = vmatprep.subr.mxu0 0.0
  %81 = vmatpush1.msra.mxu0 0.0
  %82 = vmatprep.subr.mxu0 0.0
  %83 = vmatpush1.msra.mxu0 0.0
  %84 = vmatprep.subr.mxu0 0.0
  %85 = vmatpush1.msra.mxu0 0.0
  %86 = vmatprep.subr.mxu0 0.0
  %87 = vmatpush1.msra.mxu0 0.0
  %88 = vmatprep.subr.mxu0 0.0
  %89 = vmatpush1.msra.mxu0 0.0
  %90 = vmatprep.subr.mxu0 0.0
  %91 = vmatpush1.msra.mxu0 0.0
  %92 = vmatprep.mubr.f32.mxu0 0.0
  %93 = vmatmul.mubr.f32.gmra.mrb[0].mxu0 %v26
  %v94 = vpop.f32.mrb[0].mxu0
  %v95 = vadd.f32 0.0, %v94
  %v96 = vpop.f32.mrb[0].mxu0
  %97 = vdwg.mxu0
  %v99 = vsel %vm24, %v20, 0
  %101 = vmatprep.subr.mxu0 0.0
  %102 = vmatpush1.msra.mxu0 %v21
  %103 = vmatprep.subr.mxu0 0.0
  %104 = vmatpush1.msra.mxu0 0.0
  %105 = vmatprep.subr.mxu0 0.0
  %106 = vmatpush1.msra.mxu0 0.0
  %107 = vmatprep.subr.mxu0 0.0
  %108 = vmatpush1.msra.mxu0 0.0
  %109 = vmatprep.subr.mxu0 0.0
  %110 = vmatpush1.msra.mxu0 0.0
  %111 = vmatprep.subr.mxu0 0.0
  %112 = vmatpush1.msra.mxu0 0.0
  %113 = vmatprep.subr.mxu0 0.0
  %114 = vmatpush1.msra.mxu0 0.0
  %115 = vmatprep.subr.mxu0 0.0
  %116 = vmatpush1.msra.mxu0 0.0
  %117 = vmatprep.subr.mxu0 0.0
  %118 = vmatpush1.msra.mxu0 0.0
  %119 = vmatprep.subr.mxu0 0.0
  %120 = vmatpush1.msra.mxu0 0.0
  %121 = vmatprep.subr.mxu0 0.0
  %122 = vmatpush1.msra.mxu0 0.0
  %123 = vmatprep.subr.mxu0 0.0
  %124 = vmatpush1.msra.mxu0 0.0
  %125 = vmatprep.subr.mxu0 0.0
  %126 = vmatpush1.msra.mxu0 0.0
  %127 = vmatprep.subr.mxu0 0.0
  %128 = vmatpush1.msra.mxu0 0.0
  %129 = vmatprep.subr.mxu0 0.0
  %130 = vmatpush1.msra.mxu0 0.0
  %131 = vmatprep.subr.mxu0 0.0
  %132 = vmatpush1.msra.mxu0 0.0
  %133 = vmatprep.subr.mxu0 0.0
  %134 = vmatpush1.msra.mxu0 0.0
  %135 = vmatprep.subr.mxu0 0.0
  %136 = vmatpush1.msra.mxu0 0.0
  %137 = vmatprep.subr.mxu0 0.0
  %138 = vmatpush1.msra.mxu0 0.0
  %139 = vmatprep.subr.mxu0 0.0
  %140 = vmatpush1.msra.mxu0 0.0
  %141 = vmatprep.subr.mxu0 0.0
  %142 = vmatpush1.msra.mxu0 0.0
  %143 = vmatprep.subr.mxu0 0.0
  %144 = vmatpush1.msra.mxu0 0.0
  %145 = vmatprep.subr.mxu0 0.0
  %146 = vmatpush1.msra.mxu0 0.0
  %147 = vmatprep.subr.mxu0 0.0
  %148 = vmatpush1.msra.mxu0 0.0
  %149 = vmatprep.subr.mxu0 0.0
  %150 = vmatpush1.msra.mxu0 0.0
  %151 = vmatprep.subr.mxu0 0.0
  %152 = vmatpush1.msra.mxu0 0.0
  %153 = vmatprep.subr.mxu0 0.0
  %154 = vmatpush1.msra.mxu0 0.0
  %155 = vmatprep.subr.mxu0 0.0
  %156 = vmatpush1.msra.mxu0 0.0
  %157 = vmatprep.subr.mxu0 0.0
  %158 = vmatpush1.msra.mxu0 0.0
  %159 = vmatprep.subr.mxu0 0.0
  %160 = vmatpush1.msra.mxu0 0.0
  %161 = vmatprep.subr.mxu0 0.0
  %162 = vmatpush1.msra.mxu0 0.0
  %163 = vmatprep.subr.mxu0 0.0
  %164 = vmatpush1.msra.mxu0 0.0
  %165 = vmatprep.mubr.f32.mxu0 0.0
  %166 = vmatmul.mubr.f32.gmra.mrb[0].mxu0 %v99
  %v167 = vpop.f32.mrb[0].mxu0
  %v168 = vadd.f32 %v95, %v167
  %v169 = vpop.f32.mrb[0].mxu0
  %170 = vdwg.mxu0
  %vm171 = vcmp.ge.f32.partialorder %v168, 0.0
  %v172 = vmul.f32 %v168, 0.1
  %v173 = vsel %vm171, %v168, %v172
  %v174 = vld [vmem:[%s4] sm:$0xff]
  %vm175 = vcmask 31744
  %v177 = vsel %vm175, %v174, 0
  %vm179 = vcmask 1043456
  %v181 = vsel %vm179, %v173, 0
  %183 = vmatprep.subr.mxu0 0.0
  %184 = vmatpush1.msra.mxu0 %v181
  %185 = vmatprep.subr.mxu0 0.0
  %186 = vmatpush1.msra.mxu0 0.0
  %187 = vmatprep.subr.mxu0 0.0
  %188 = vmatpush1.msra.mxu0 0.0
  %189 = vmatprep.subr.mxu0 0.0
  %190 = vmatpush1.msra.mxu0 0.0
  %191 = vmatprep.subr.mxu0 0.0
  %192 = vmatpush1.msra.mxu0 0.0
  %193 = vmatprep.subr.mxu0 0.0
  %194 = vmatpush1.msra.mxu0 0.0
  %195 = vmatprep.subr.mxu0 0.0
  %196 = vmatpush1.msra.mxu0 0.0
  %197 = vmatprep.subr.mxu0 0.0
  %198 = vmatpush1.msra.mxu0 0.0
  %199 = vmatprep.subr.mxu0 0.0
  %200 = vmatpush1.msra.mxu0 0.0
  %201 = vmatprep.subr.mxu0 0.0
  %202 = vmatpush1.msra.mxu0 0.0
  %203 = vmatprep.subr.mxu0 0.0
  %204 = vmatpush1.msra.mxu0 0.0
  %205 = vmatprep.subr.mxu0 0.0
  %206 = vmatpush1.msra.mxu0 0.0
  %207 = vmatprep.subr.mxu0 0.0
  %208 = vmatpush1.msra.mxu0 0.0
  %209 = vmatprep.subr.mxu0 0.0
  %210 = vmatpush1.msra.mxu0 0.0
  %211 = vmatprep.subr.mxu0 0.0
  %212 = vmatpush1.msra.mxu0 0.0
  %213 = vmatprep.subr.mxu0 0.0
  %214 = vmatpush1.msra.mxu0 0.0
  %215 = vmatprep.subr.mxu0 0.0
  %216 = vmatpush1.msra.mxu0 0.0
  %217 = vmatprep.subr.mxu0 0.0
  %218 = vmatpush1.msra.mxu0 0.0
  %219 = vmatprep.subr.mxu0 0.0
  %220 = vmatpush1.msra.mxu0 0.0
  %221 = vmatprep.subr.mxu0 0.0
  %222 = vmatpush1.msra.mxu0 0.0
  %223 = vmatprep.subr.mxu0 0.0
  %224 = vmatpush1.msra.mxu0 0.0
  %225 = vmatprep.subr.mxu0 0.0
  %226 = vmatpush1.msra.mxu0 0.0
  %227 = vmatprep.subr.mxu0 0.0
  %228 = vmatpush1.msra.mxu0 0.0
  %229 = vmatprep.subr.mxu0 0.0
  %230 = vmatpush1.msra.mxu0 0.0
  %231 = vmatprep.subr.mxu0 0.0
  %232 = vmatpush1.msra.mxu0 0.0
  %233 = vmatprep.subr.mxu0 0.0
  %234 = vmatpush1.msra.mxu0 0.0
  %235 = vmatprep.subr.mxu0 0.0
  %236 = vmatpush1.msra.mxu0 0.0
  %237 = vmatprep.subr.mxu0 0.0
  %238 = vmatpush1.msra.mxu0 0.0
  %239 = vmatprep.subr.mxu0 0.0
  %240 = vmatpush1.msra.mxu0 0.0
  %241 = vmatprep.subr.mxu0 0.0
  %242 = vmatpush1.msra.mxu0 0.0
  %243 = vmatprep.subr.mxu0 0.0
  %244 = vmatpush1.msra.mxu0 0.0
  %245 = vmatprep.subr.mxu0 0.0
  %246 = vmatpush1.msra.mxu0 0.0
  %247 = vmatprep.mubr.f32.mxu0 0.0
  %248 = vmatmul.mubr.f32.gmra.mrb[0].mxu0 %v177
  %v249 = vpop.f32.mrb[0].mxu0
  %v250 = vadd.f32 0.0, %v249
  %v251 = vpop.f32.mrb[0].mxu0
  %252 = vdwg.mxu0
  %v253 = vsub.f32 0.0, %v250
  %v254 = vmul.f32 %v253, 1.442695
  %v255 = vpow.pop %v254
  %v256 = vadd.f32 %v255, 1.0
  %v257 = vrcp.pop %v256
  %v258 = vmul.f32 1.0, %v257
  %v259 = vadd.f32 %v258, 1.0
  %vm260 = vcmask 15360
  %261 = vst.msk [vmem:[%s5] sm:$0xff] %vm260, %v259
  // Predicated region
  $region22: #{da_conv_forward.4} parent=0 // pred_check
    _
  $region23: #{da_conv_forward.4} parent=0 // pred_check_branch
    %263 = sbr.rel (0) target = $region25
  $region24: #{da_conv_forward.4} parent=0 // pred_region
    _
  $region25: #{da_conv_forward.4} parent=0 // pred_fallthru
    _
  // Predicated region
  $region26: #{da_conv_forward.4} parent=0 // pred_check
    _
  $region27: #{da_conv_forward.4} parent=0 // pred_check_branch
    %265 = sbr.rel (0) target = $region29
  $region28: #{da_conv_forward.4} parent=0 // pred_region
    _
  $region29: #{da_conv_forward.4} parent=0 // pred_fallthru
    _

</llo_original>
